<compile_context>
chip_gen: v7x
topology: tpu7x:2x2x1
jax: 0.10.0
libtpu: 0.0.40
codegen_flags: <defaults>
</compile_context>

<pallas_src>
import functools

import jax
import jax.numpy as jnp
from jax import lax
from jax.experimental import pallas as pl
from jax.experimental.pallas import tpu as pltpu


def _clip_loss_kernel(cat_ref, row_ref, colt_ref, cmax_ref, csum_ref, *,
                      temperature, dp, tq, bounded_logits):
    """One row tile: emit per-tile partials (no cross-step state).

    cat_ref : (N, 2*dp) resident [bert | gnn], dp lane-aligned.
    row_ref : (1,1,1)  sum_i [lse_row_i - 2*sum_j t_ij*l_ij] over this tile's rows.
    colt_ref: (1,1,N)  column sums of targets over this tile's rows.
    cmax_ref: (1,1,N)  per-tile column max of logits.
    csum_ref: (1,1,N)  per-tile column sum of exp(logits - cmax).
    """
    i = pl.program_id(0)
    inv_t = 1.0 / temperature       # Python floats: weak-typed, operand dtype kept.
    inv_2t = 0.5 / temperature

    row0 = i * tq
    if tq % 8 == 0:
        row0 = pl.multiple_of(row0, 8)

    cat_full = cat_ref[...]                       # (N, 2*dp), resident
    cat_tile = cat_ref[pl.ds(row0, tq), :]        # (tq, 2*dp)
    b_tile = cat_tile[:, :dp]                     # lane-aligned static slices
    g_full = cat_full[:, dp:]                     # (N, dp)

    dn = (((1,), (1,)), ((), ()))                 # contract last dims: A @ B.T

    # (bert_sim + gnn_sim) / (2T) in ONE matmul (K = 2*dp); 1/(2T) folded into
    # the small (tq, 2dp) LHS operand.
    sim = lax.dot_general(cat_tile * inv_2t, cat_full, dn,
                          preferred_element_type=jnp.float32)       # (tq, N)
    # logits = bert @ gnn.T / T
    logits = lax.dot_general(b_tile * inv_t, g_full, dn,
                             preferred_element_type=jnp.float32)    # (tq, N)

    # --- targets = softmax(sim), kept unnormalized (t_exp, 1/denom) ----------
    s_max = jnp.max(sim, axis=-1, keepdims=True)
    t_exp = jnp.exp(sim - s_max)                                    # (tq, N) exp #1
    t_den = jnp.sum(t_exp, axis=-1, keepdims=True)
    inv_den = pl.reciprocal(t_den, approx=True)
    inv_den = inv_den * (2.0 - t_den * inv_den)                     # Newton step (VALU)

    # --- row logsumexp of logits ---------------------------------------------
    r_max = jnp.max(logits, axis=-1, keepdims=True)
    e_row = jnp.exp(logits - r_max)                                 # (tq, N) exp #2
    lse_row = r_max + jnp.log(jnp.sum(e_row, axis=-1, keepdims=True))

    # --- bert CE + logits half of gnn CE (uses sum_j targets_ij == 1) --------
    tl = jnp.sum(t_exp * logits, axis=-1, keepdims=True)            # (tq, 1)
    row_term = lse_row - 2.0 * (inv_den * tl)                       # (tq, 1)
    row_ref[...] = jnp.sum(row_term, axis=0, keepdims=True)[None]   # (1,1,1)

    # --- column sums of targets -----------------------------------------------
    colt = jnp.sum(t_exp * inv_den, axis=0, keepdims=True)          # (1, N)
    colt_ref[...] = colt[None]

    # --- per-tile column logsumexp stats of logits ----------------------------
    c_max = jnp.max(logits, axis=0, keepdims=True)                  # (1, N)
    if bounded_logits:
        # exp reuse: exp(l - c_max) = e_row * exp(r_max - M) * exp(M - c_max),
        # M = per-tile max.  Safe when the within-tile logit spread is < ~80
        # (true for L2-normalized CLIP embeddings: |logits| <= 1/T).
        m_all = jnp.max(r_max, axis=0, keepdims=True)               # (1, 1)
        w = jnp.exp(r_max - m_all)                                  # (tq, 1) exp
        col_part = jnp.sum(e_row * w, axis=0, keepdims=True)        # (1, N)
        c_sum = col_part * jnp.exp(m_all - c_max)                   # (1, N) exp
    else:
        c_sum = jnp.sum(jnp.exp(logits - c_max), axis=0, keepdims=True)  # exp #3
    cmax_ref[...] = c_max[None]
    csum_ref[...] = c_sum[None]


def _tpu_hw_params():
    """MXU height + per-core VMEM capacity for the current TPU generation."""
    mxu_rows, vmem_bytes = 256, 64 << 20          # conservative default (v7x-like)
    try:
        kind = jax.devices()[0].device_kind.lower()
    except Exception:
        kind = ""
    if ("v5 lite" in kind) or ("v5e" in kind) or ("v5lite" in kind):
        mxu_rows, vmem_bytes = 128, 128 << 20
    elif "v6" in kind:
        mxu_rows, vmem_bytes = 256, 128 << 20
    elif "v7" in kind:
        mxu_rows, vmem_bytes = 256, 64 << 20
    elif ("v4" in kind) or ("v5" in kind):
        mxu_rows, vmem_bytes = 128, 128 << 20
    try:                                           # prefer the exact number if queryable
        cap = getattr(pltpu.get_tpu_info(), "vmem_capacity_bytes", None)
        if cap:
            vmem_bytes = int(cap)
    except Exception:
        pass
    return {"mxu_rows": mxu_rows, "vmem_bytes": vmem_bytes}


def _pick_row_tile(n, n_cols, budget_bytes, mxu_rows):
    """Largest row tile dividing n, MXU-height aligned, within the f32-intermediate budget."""
    per_row = 6 * n_cols * 4                       # ~6 live (tq, N) f32 tiles per step
    cap = max(8, min(512, budget_bytes // max(per_row, 1)))
    if n <= cap:
        return n                                   # single tile
    for step in (mxu_rows, 128, 8):
        t = (cap // step) * step
        while t >= step:
            if n % t == 0:
                return t
            t -= step
    return n                                       # no aligned divisor: single tile


def clip_loss(bert_embs, gnn_embs, labels=None, *, temperature=0.5,
              row_tile=None, bounded_logits=False):
    """Forward pass of CLIPLoss.  `labels` is unused by the reference forward."""
    del labels
    n, d = bert_embs.shape
    assert gnn_embs.shape == (n, d)
    dtype = bert_embs.dtype

    # Lane-align the feature halves so cat[:, :dp] / cat[:, dp:] are free slices.
    dp = ((d + 127) // 128) * 128
    if dp != d:
        pad = ((0, 0), (0, dp - d))                # zero columns: dot products unchanged
        bert_p = jnp.pad(bert_embs, pad)
        gnn_p = jnp.pad(gnn_embs.astype(dtype), pad)
    else:
        bert_p, gnn_p = bert_embs, gnn_embs.astype(dtype)
    cat = jnp.concatenate([bert_p, gnn_p], axis=1)              # (n, 2*dp)

    hw = _tpu_hw_params()
    itemsize = jnp.dtype(dtype).itemsize
    resident = 2 * n * (2 * dp) * itemsize         # Pallas double-buffers the resident input
    budget = max(hw["vmem_bytes"] - resident - (6 << 20), 2 << 20)

    if row_tile is None:
        tq = _pick_row_tile(n, n, budget, hw["mxu_rows"])
    else:
        tq = int(row_tile)
        if tq != n and (tq % 8 != 0 or n % tq != 0):
            raise ValueError(f"row_tile={tq} must be a multiple of 8 dividing n={n}")
    g = n // tq

    est = resident + 6 * tq * n * 4 + 8 * n * 4 + (2 << 20)
    cap = hw["vmem_bytes"] - ((28 << 20) if hw["vmem_bytes"] >= (96 << 20) else (16 << 20))
    vmem_limit = int(min(max(int(est * 1.4), 16 << 20), max(cap, 16 << 20)))

    kernel = functools.partial(_clip_loss_kernel, temperature=float(temperature),
                               dp=dp, tq=tq, bounded_logits=bool(bounded_logits))

    out_shapes = (
        jax.ShapeDtypeStruct((g, 1, 1), jnp.float32),    # per-tile row-term partial
        jax.ShapeDtypeStruct((g, 1, n), jnp.float32),    # per-tile column sums of targets
        jax.ShapeDtypeStruct((g, 1, n), jnp.float32),    # per-tile column max of logits
        jax.ShapeDtypeStruct((g, 1, n), jnp.float32),    # per-tile column sum-exp of logits
    )
    row_part, colt, cmax, csum = pl.pallas_call(
        kernel,
        out_shape=out_shapes,
        grid_spec=pltpu.PrefetchScalarGridSpec(
            num_scalar_prefetch=0,
            grid=(g,),
            in_specs=[pl.BlockSpec((n, 2 * dp), lambda i: (0, 0))],   # resident
            out_specs=[
                pl.BlockSpec((1, 1, 1), lambda i: (i, 0, 0)),
                pl.BlockSpec((1, 1, n), lambda i: (i, 0, 0)),
                pl.BlockSpec((1, 1, n), lambda i: (i, 0, 0)),
                pl.BlockSpec((1, 1, n), lambda i: (i, 0, 0)),
            ],
        ),
        compiler_params=pltpu.CompilerParams(
            dimension_semantics=("parallel",),      # row tiles independent -> megacore on v7x
            vmem_limit_bytes=vmem_limit),
    )(cat)

    # Tiny O(G*N) epilogue in plain XLA: merge per-tile column LSE + target sums.
    cmax_all = jnp.max(cmax, axis=0)                                   # (1, n)
    csum_all = jnp.sum(csum * jnp.exp(cmax - cmax_all), axis=0)        # (1, n)
    lse_col = cmax_all + jnp.log(csum_all)
    colt_all = jnp.sum(colt, axis=0)                                   # (1, n)
    loss = (jnp.sum(row_part) + jnp.sum(colt_all * lse_col)) * (0.5 / n)
    return loss


def clip_loss_ref(bert_embs, gnn_embs, temperature):
    b = bert_embs.astype(jnp.float32)
    g = gnn_embs.astype(jnp.float32)
    gnn_sim = g @ g.T
    bert_sim = b @ b.T
    targets = jax.nn.softmax((gnn_sim + bert_sim) / (2.0 * temperature), axis=-1)
    logits = b @ g.T / temperature
    gnn_loss = jnp.sum(-targets.T * jax.nn.log_softmax(logits.T, axis=-1), axis=1)
    bert_loss = jnp.sum(-targets * jax.nn.log_softmax(logits, axis=-1), axis=1)
    return jnp.mean((gnn_loss + bert_loss) / 2.0)


if __name__ == "__main__":
    # Small deterministic example: batch N=128, hidden D=128 (lane/MXU friendly).
    N, D = 128, 128
    temperature = 0.5

    key = jax.random.PRNGKey(0)
    k_bert, k_gnn, k_lab = jax.random.split(key, 3)
    bert_embs = jax.random.normal(k_bert, (N, D), dtype=jnp.float32)
    gnn_embs = jax.random.normal(k_gnn, (N, D), dtype=jnp.float32)
    # CLIP-style embeddings are L2-normalized; keeps |logits| <= 1/T bounded.
    bert_embs = bert_embs / jnp.linalg.norm(bert_embs, axis=-1, keepdims=True)
    gnn_embs = gnn_embs / jnp.linalg.norm(gnn_embs, axis=-1, keepdims=True)
    labels = jax.random.randint(k_lab, (N,), 0, N)   # unused, signature parity

    ref = jax.block_until_ready(clip_loss_ref(bert_embs, gnn_embs, temperature))

    # Multi-tile path (2 grid steps) + the exp-reuse fast path (inputs are normalized).
    loss_a = clip_loss(bert_embs, gnn_embs, labels, temperature=temperature,
                       row_tile=64, bounded_logits=True)
    loss_a = jax.block_until_ready(loss_a)
    assert jnp.allclose(loss_a, ref, atol=1e-3, rtol=1e-3), (loss_a, ref)

    # Default auto-tiled path (single tile at this size) + safe column-LSE path.
    loss_b = clip_loss(bert_embs, gnn_embs, labels, temperature=temperature)
    loss_b = jax.block_until_ready(loss_b)
    assert jnp.allclose(loss_b, ref, atol=1e-3, rtol=1e-3), (loss_b, ref)

    print("KERNEL_OK")
</pallas_src>

<mosaic_0001>
module attributes {stable_mosaic.version = 11 : i64} {
  func.func @_clip_loss_kernel(%arg0: i32, %arg1: memref<128x256xf32, #tpu.memory_space<vmem>>, %arg2: memref<1x1x1xf32, #tpu.memory_space<vmem>>, %arg3: memref<1x1x128xf32, #tpu.memory_space<vmem>>, %arg4: memref<1x1x128xf32, #tpu.memory_space<vmem>>, %arg5: memref<1x1x128xf32, #tpu.memory_space<vmem>>) attributes {dimension_semantics = [#tpu.dimension_semantics<parallel>], iteration_bounds = array<i64: 2>, scalar_prefetch = 0 : i64, scratch_operands = 0 : i64, tpu.core_type = #tpu.core_type<tc>, window_params = [{pipeline_mode = #tpu.pipeline_mode<synchronous>, transform_indices = @transform_0, window_bounds = array<i64: 128, 256>}, {transform_indices = @transform_1, window_bounds = array<i64: 1, 1, 1>}, {transform_indices = @transform_2, window_bounds = array<i64: 1, 1, 128>}, {transform_indices = @transform_3, window_bounds = array<i64: 1, 1, 128>}, {transform_indices = @transform_4, window_bounds = array<i64: 1, 1, 128>}]} {
    %c64_i32 = arith.constant 64 : i32
    %0 = arith.muli %arg0, %c64_i32 : i32
    %1 = tpu.assume_multiple %0, 8 : i32
    %c0 = arith.constant 0 : index
    %c0_0 = arith.constant 0 : index
    %2 = vector.load %arg1[%c0, %c0_0] : memref<128x256xf32, #tpu.memory_space<vmem>>, vector<128x256xf32>
    %3 = arith.index_cast %1 : i32 to index
    %c0_1 = arith.constant 0 : index
    %4 = vector.load %arg1[%3, %c0_1] : memref<128x256xf32, #tpu.memory_space<vmem>>, vector<64x256xf32>
    %5 = vector.extract_strided_slice %4 {offsets = [0, 0], sizes = [64, 128], strides = [1, 1]} : vector<64x256xf32> to vector<64x128xf32>
    %6 = vector.extract_strided_slice %2 {offsets = [0, 128], sizes = [128, 128], strides = [1, 1]} : vector<128x256xf32> to vector<128x128xf32>
    %cst = arith.constant 1.000000e+00 : f32
    %7 = vector.broadcast %cst : f32 to vector<64x256xf32>
    %8 = arith.mulf %4, %7 : vector<64x256xf32>
    %cst_2 = arith.constant dense<0.000000e+00> : vector<64x128xf32>
    %9 = tpu.matmul %8, %2, %cst_2 {dimension_numbers = #tpu.dot_dimension_numbers<[1], [1], [0], [0], [0, 0, 1, 0], [], []>} : vector<64x256xf32>, vector<128x256xf32>, vector<64x128xf32> -> vector<64x128xf32>
    %cst_3 = arith.constant 2.000000e+00 : f32
    %10 = vector.broadcast %cst_3 : f32 to vector<64x128xf32>
    %11 = arith.mulf %5, %10 : vector<64x128xf32>
    %cst_4 = arith.constant dense<0.000000e+00> : vector<64x128xf32>
    %12 = tpu.matmul %11, %6, %cst_4 {dimension_numbers = #tpu.dot_dimension_numbers<[1], [1], [0], [0], [0, 0, 1, 0], [], []>} : vector<64x128xf32>, vector<128x128xf32>, vector<64x128xf32> -> vector<64x128xf32>
    %cst_5 = arith.constant dense<0xFF800000> : vector<64xf32>
    %13 = vector.multi_reduction <maximumf>, %9, %cst_5 [1] : vector<64x128xf32> to vector<64xf32>
    %14 = vector.shape_cast %13 : vector<64xf32> to vector<64x1xf32>
    %15 = vector.broadcast %14 : vector<64x1xf32> to vector<64x128xf32>
    %16 = arith.subf %9, %15 : vector<64x128xf32>
    %17 = math.exp %16 : vector<64x128xf32>
    %cst_6 = arith.constant dense<0.000000e+00> : vector<64xf32>
    %18 = vector.multi_reduction <add>, %17, %cst_6 [1] : vector<64x128xf32> to vector<64xf32>
    %19 = vector.shape_cast %18 : vector<64xf32> to vector<64x1xf32>
    %20 = tpu.reciprocal %19 {approx = true} : vector<64x1xf32> -> vector<64x1xf32>
    %21 = arith.mulf %19, %20 : vector<64x1xf32>
    %cst_7 = arith.constant 2.000000e+00 : f32
    %22 = vector.broadcast %cst_7 : f32 to vector<64x1xf32>
    %23 = arith.subf %22, %21 : vector<64x1xf32>
    %24 = arith.mulf %20, %23 : vector<64x1xf32>
    %cst_8 = arith.constant dense<0xFF800000> : vector<64xf32>
    %25 = vector.multi_reduction <maximumf>, %12, %cst_8 [1] : vector<64x128xf32> to vector<64xf32>
    %26 = vector.shape_cast %25 : vector<64xf32> to vector<64x1xf32>
    %27 = vector.broadcast %26 : vector<64x1xf32> to vector<64x128xf32>
    %28 = arith.subf %12, %27 : vector<64x128xf32>
    %29 = math.exp %28 : vector<64x128xf32>
    %cst_9 = arith.constant dense<0.000000e+00> : vector<64xf32>
    %30 = vector.multi_reduction <add>, %29, %cst_9 [1] : vector<64x128xf32> to vector<64xf32>
    %31 = vector.shape_cast %30 : vector<64xf32> to vector<64x1xf32>
    %32 = math.log %31 : vector<64x1xf32>
    %33 = arith.addf %26, %32 : vector<64x1xf32>
    %34 = arith.mulf %17, %12 : vector<64x128xf32>
    %cst_10 = arith.constant dense<0.000000e+00> : vector<64xf32>
    %35 = vector.multi_reduction <add>, %34, %cst_10 [1] : vector<64x128xf32> to vector<64xf32>
    %36 = vector.shape_cast %35 : vector<64xf32> to vector<64x1xf32>
    %37 = arith.mulf %24, %36 : vector<64x1xf32>
    %cst_11 = arith.constant 2.000000e+00 : f32
    %38 = vector.broadcast %cst_11 : f32 to vector<64x1xf32>
    %39 = arith.mulf %38, %37 : vector<64x1xf32>
    %40 = arith.subf %33, %39 : vector<64x1xf32>
    %cst_12 = arith.constant dense<0.000000e+00> : vector<1xf32>
    %41 = vector.multi_reduction <add>, %40, %cst_12 [0] : vector<64x1xf32> to vector<1xf32>
    %42 = vector.shape_cast %41 : vector<1xf32> to vector<1x1xf32>
    %43 = vector.shape_cast %42 : vector<1x1xf32> to vector<1x1x1xf32>
    %c0_13 = arith.constant 0 : index
    %c0_14 = arith.constant 0 : index
    %c0_15 = arith.constant 0 : index
    %44 = vector.load %arg2[%c0_13, %c0_14, %c0_15] : memref<1x1x1xf32, #tpu.memory_space<vmem>>, vector<1x1x1xf32>
    tpu.vector_store %arg2[%c0_13, %c0_14, %c0_15], %43 {strides = array<i32>} : memref<1x1x1xf32, #tpu.memory_space<vmem>>, vector<1x1x1xf32>,
    %45 = vector.broadcast %24 : vector<64x1xf32> to vector<64x128xf32>
    %46 = arith.mulf %17, %45 : vector<64x128xf32>
    %cst_16 = arith.constant dense<0.000000e+00> : vector<128xf32>
    %47 = vector.multi_reduction <add>, %46, %cst_16 [0] : vector<64x128xf32> to vector<128xf32>
    %48 = vector.shape_cast %47 : vector<128xf32> to vector<1x128xf32>
    %49 = vector.shape_cast %48 : vector<1x128xf32> to vector<1x1x128xf32>
    %c0_17 = arith.constant 0 : index
    %c0_18 = arith.constant 0 : index
    %c0_19 = arith.constant 0 : index
    %50 = vector.load %arg3[%c0_17, %c0_18, %c0_19] : memref<1x1x128xf32, #tpu.memory_space<vmem>>, vector<1x1x128xf32>
    tpu.vector_store %arg3[%c0_17, %c0_18, %c0_19], %49 {strides = array<i32>} : memref<1x1x128xf32, #tpu.memory_space<vmem>>, vector<1x1x128xf32>,
    %cst_20 = arith.constant dense<0xFF800000> : vector<128xf32>
    %51 = vector.multi_reduction <maximumf>, %12, %cst_20 [0] : vector<64x128xf32> to vector<128xf32>
    %52 = vector.shape_cast %51 : vector<128xf32> to vector<1x128xf32>
    %cst_21 = arith.constant dense<0xFF800000> : vector<1xf32>
    %53 = vector.multi_reduction <maximumf>, %26, %cst_21 [0] : vector<64x1xf32> to vector<1xf32>
    %54 = vector.shape_cast %53 : vector<1xf32> to vector<1x1xf32>
    %55 = vector.broadcast %54 : vector<1x1xf32> to vector<64x1xf32>
    %56 = arith.subf %26, %55 : vector<64x1xf32>
    %57 = math.exp %56 : vector<64x1xf32>
    %58 = vector.broadcast %57 : vector<64x1xf32> to vector<64x128xf32>
    %59 = arith.mulf %29, %58 : vector<64x128xf32>
    %cst_22 = arith.constant dense<0.000000e+00> : vector<128xf32>
    %60 = vector.multi_reduction <add>, %59, %cst_22 [0] : vector<64x128xf32> to vector<128xf32>
    %61 = vector.shape_cast %60 : vector<128xf32> to vector<1x128xf32>
    %62 = vector.broadcast %54 : vector<1x1xf32> to vector<1x128xf32>
    %63 = arith.subf %62, %52 : vector<1x128xf32>
    %64 = math.exp %63 : vector<1x128xf32>
    %65 = arith.mulf %61, %64 : vector<1x128xf32>
    %66 = vector.shape_cast %52 : vector<1x128xf32> to vector<1x1x128xf32>
    %c0_23 = arith.constant 0 : index
    %c0_24 = arith.constant 0 : index
    %c0_25 = arith.constant 0 : index
    %67 = vector.load %arg4[%c0_23, %c0_24, %c0_25] : memref<1x1x128xf32, #tpu.memory_space<vmem>>, vector<1x1x128xf32>
    tpu.vector_store %arg4[%c0_23, %c0_24, %c0_25], %66 {strides = array<i32>} : memref<1x1x128xf32, #tpu.memory_space<vmem>>, vector<1x1x128xf32>,
    %68 = vector.shape_cast %65 : vector<1x128xf32> to vector<1x1x128xf32>
    %c0_26 = arith.constant 0 : index
    %c0_27 = arith.constant 0 : index
    %c0_28 = arith.constant 0 : index
    %69 = vector.load %arg5[%c0_26, %c0_27, %c0_28] : memref<1x1x128xf32, #tpu.memory_space<vmem>>, vector<1x1x128xf32>
    tpu.vector_store %arg5[%c0_26, %c0_27, %c0_28], %68 {strides = array<i32>} : memref<1x1x128xf32, #tpu.memory_space<vmem>>, vector<1x1x128xf32>,
    return
  }
  func.func @transform_0(%arg0: i32) -> (i32, i32) {
    %c0_i32 = arith.constant 0 : i32
    %c0_i32_0 = arith.constant 0 : i32
    %c0_i32_1 = arith.constant 0 : i32
    return %c0_i32, %c0_i32_0 : i32, i32
  }
  func.func @transform_1(%arg0: i32) -> (i32, i32, i32) {
    %c0_i32 = arith.constant 0 : i32
    %c0_i32_0 = arith.constant 0 : i32
    %c0_i32_1 = arith.constant 0 : i32
    return %arg0, %c0_i32, %c0_i32_0 : i32, i32, i32
  }
  func.func @transform_2(%arg0: i32) -> (i32, i32, i32) {
    %c0_i32 = arith.constant 0 : i32
    %c0_i32_0 = arith.constant 0 : i32
    %c0_i32_1 = arith.constant 0 : i32
    return %arg0, %c0_i32, %c0_i32_0 : i32, i32, i32
  }
  func.func @transform_3(%arg0: i32) -> (i32, i32, i32) {
    %c0_i32 = arith.constant 0 : i32
    %c0_i32_0 = arith.constant 0 : i32
    %c0_i32_1 = arith.constant 0 : i32
    return %arg0, %c0_i32, %c0_i32_0 : i32, i32, i32
  }
  func.func @transform_4(%arg0: i32) -> (i32, i32, i32) {
    %c0_i32 = arith.constant 0 : i32
    %c0_i32_0 = arith.constant 0 : i32
    %c0_i32_1 = arith.constant 0 : i32
    return %arg0, %c0_i32, %c0_i32_0 : i32, i32, i32
  }
}

</mosaic_0001>

<llo_original>
// kernel: tpu_custom_call.1
$region0: #{tpu_custom_call.1}
  #allocation0 [shape = 'u32[]', space=smem, size = 0x4, offset = 0x4, fixed_abs, tag = 'smem constant byte address 0x4 - core index']
  #allocation1 [shape = 'u32[144,128]{1,0:T(1,128)}', space=vmem, size = 0x12000, scoped, tag = 'internal scratch']
  %s0 = inlined_call_operand.hbm [shape: f32[128,256], index: 0, kind: input, shape index: {}]
  %s1 = inlined_call_operand.vmem [shape: f32[2,1,1], index: 1, kind: output, shape index: {0}]
  %s2 = inlined_call_operand.hbm [shape: f32[2,1,128], index: 2, kind: output, shape index: {1}]
  %s3 = inlined_call_operand.hbm [shape: f32[2,1,128], index: 3, kind: output, shape index: {2}]
  %s4 = inlined_call_operand.hbm [shape: f32[2,1,128], index: 4, kind: output, shape index: {3}]
  %5 = xla_tuple %s1, %s2, %s3, %s4
  %s6 = sld [smem:[#allocation0]]
  $region65: #{tpu_custom_call.1} parent=0
    _
  %s8 = ssub.s32 1, %s6
  %s9 = scalar_select 0, %s8, %s6
  $region1: #{tpu_custom_call.1} parent=0
    #allocation2 [shape = 'u8[131072]{0}', space=vmem, size = 0x20000, scoped, tag = 'input window, operand 0, single buffered']
    #allocation3 [shape = 's32[2]{0}', space=sflag, size = 0x8, scoped, tag = 'scoped memory for tpu_custom_call.1']
    #allocation4 [shape = 's32[2]{0}', space=sflag, size = 0x8, scoped, tag = 'scoped memory for tpu_custom_call.1']
    #allocation5 [shape = 'u8[1024]{0}', space=vmem, size = 0x400, scoped, tag = 'output window, operand 1']
    #allocation6 [shape = 'u8[1024]{0}', space=vmem, size = 0x400, scoped, tag = 'output window, operand 2']
    #allocation7 [shape = 's32[2]{0}', space=sflag, size = 0x8, scoped, tag = 'scoped memory for tpu_custom_call.1']
    #allocation8 [shape = 'u8[1024]{0}', space=vmem, size = 0x400, scoped, tag = 'output window, operand 3']
    %10 = vsyncpa [#allocation3], 0
    %11 = vsyncpa [#allocation4], 0
    %s12 = scalar_lea.sflag [#allocation4], 1
    %13 = vsyncpa %s12, 0
    %14 = vsyncpa [#allocation7], 0
    %s15 = scalar_lea.sflag [#allocation7], 1
    %16 = vsyncpa %s15, 0
    loop: start=0, step=1, limit=4
    $region2: #{tpu_custom_call.1} parent=1 // loop_pre_header
      _
    $region3: #{tpu_custom_call.1} parent=1 // loop_header
      %s18 = sphi 0, %s22
      %p19 = scmp.ge.s32.totalorder %s18, 4
      %s26 = sphi 0, %s26
      %s28 = sphi 0, %s26
      %s29 = sphi 0, %s28
      %s43 = sphi 0, %s29
      %s49 = sphi 0, %s51
      %s52 = sphi 0, %s49
      %s53 = sphi 0, %s52
      %s69 = sphi 0, %s53
      %s75 = sphi 0, %s77
      %s78 = sphi 0, %s75
      %s79 = sphi 0, %s78
      %s95 = sphi 0, %s79
      %s101 = sphi 0, %s103
      %s104 = sphi 0, %s101
      %s105 = sphi 0, %s104
      %s121 = sphi 0, %s105
      %s127 = sphi 0, %s129
      %s130 = sphi 0, %s127
      %s131 = sphi 0, %s130
      %s147 = sphi 0, %s131
    $region4: #{tpu_custom_call.1} parent=1 // loop_header_branch
      %21 = sbr.rel (%p19) target = $region8
    $region5: #{tpu_custom_call.1} parent=1 // loop_body
      %s23 = ssub.s32 %s18, 1
      %s24 = ssub.s32 %s18, 2
      %s25 = sadd.s32 %s18, 1
      %s27 = sadd.s32 %s26, 1
      %p30 = scmp.eq.s32.totalorder %s18, 1
      %p31 = scmp.ne.s32.totalorder %s26, %s28
      %p32 = scmp.eq.s32.totalorder %s18, 0
      %p33 = por %p31, %p32
      %p34 = scmp.ne.s32.totalorder %s26, %s28
      %p35 = scmp.eq.s32.totalorder %s23, 1
      %p36 = por %p34, %p35
      %p37 = scmp.ne.s32.totalorder %s28, %s29
      %p38 = scmp.eq.s32.totalorder %s23, 0
      %p39 = por %p37, %p38
      %p40 = scmp.ne.s32.totalorder %s28, %s29
      %p41 = scmp.eq.s32.totalorder %s24, 1
      %p42 = por %p40, %p41
      %p44 = scmp.ne.s32.totalorder %s29, %s43
      %p45 = scmp.eq.s32.totalorder %s24, 0
      %p46 = por %p44, %p45
      %s47 = ssub.s32 %s18, %s25
      %p48 = scmp.eq.s32.totalorder %s47, 0
      %s50 = sadd.s32 %s49, 1
      %s51 = scalar_select %p48, %s49, %s50
      %p54 = pneg %p48
      %p55 = scmp.eq.s32.totalorder %s18, 1
      %p56 = por %p54, %p55
      %p57 = scmp.ne.s32.totalorder %s49, %s52
      %p58 = scmp.eq.s32.totalorder %s18, 0
      %p59 = por %p57, %p58
      %p60 = scmp.ne.s32.totalorder %s49, %s52
      %p61 = scmp.eq.s32.totalorder %s23, 1
      %p62 = por %p60, %p61
      %p63 = scmp.ne.s32.totalorder %s52, %s53
      %p64 = scmp.eq.s32.totalorder %s23, 0
      %p65 = por %p63, %p64
      %p66 = scmp.ne.s32.totalorder %s52, %s53
      %p67 = scmp.eq.s32.totalorder %s24, 1
      %p68 = por %p66, %p67
      %p70 = scmp.ne.s32.totalorder %s53, %s69
      %p71 = scmp.eq.s32.totalorder %s24, 0
      %p72 = por %p70, %p71
      %s73 = ssub.s32 %s18, %s25
      %p74 = scmp.eq.s32.totalorder %s73, 0
      %s76 = sadd.s32 %s75, 1
      %s77 = scalar_select %p74, %s75, %s76
      %p80 = pneg %p74
      %p81 = scmp.eq.s32.totalorder %s18, 1
      %p82 = por %p80, %p81
      %p83 = scmp.ne.s32.totalorder %s75, %s78
      %p84 = scmp.eq.s32.totalorder %s18, 0
      %p85 = por %p83, %p84
      %p86 = scmp.ne.s32.totalorder %s75, %s78
      %p87 = scmp.eq.s32.totalorder %s23, 1
      %p88 = por %p86, %p87
      %p89 = scmp.ne.s32.totalorder %s78, %s79
      %p90 = scmp.eq.s32.totalorder %s23, 0
      %p91 = por %p89, %p90
      %p92 = scmp.ne.s32.totalorder %s78, %s79
      %p93 = scmp.eq.s32.totalorder %s24, 1
      %p94 = por %p92, %p93
      %p96 = scmp.ne.s32.totalorder %s79, %s95
      %p97 = scmp.eq.s32.totalorder %s24, 0
      %p98 = por %p96, %p97
      %s99 = ssub.s32 %s18, %s25
      %p100 = scmp.eq.s32.totalorder %s99, 0
      %s102 = sadd.s32 %s101, 1
      %s103 = scalar_select %p100, %s101, %s102
      %p106 = pneg %p100
      %p107 = scmp.eq.s32.totalorder %s18, 1
      %p108 = por %p106, %p107
      %p109 = scmp.ne.s32.totalorder %s101, %s104
      %p110 = scmp.eq.s32.totalorder %s18, 0
      %p111 = por %p109, %p110
      %p112 = scmp.ne.s32.totalorder %s101, %s104
      %p113 = scmp.eq.s32.totalorder %s23, 1
      %p114 = por %p112, %p113
      %p115 = scmp.ne.s32.totalorder %s104, %s105
      %p116 = scmp.eq.s32.totalorder %s23, 0
      %p117 = por %p115, %p116
      %p118 = scmp.ne.s32.totalorder %s104, %s105
      %p119 = scmp.eq.s32.totalorder %s24, 1
      %p120 = por %p118, %p119
      %p122 = scmp.ne.s32.totalorder %s105, %s121
      %p123 = scmp.eq.s32.totalorder %s24, 0
      %p124 = por %p122, %p123
      %s125 = ssub.s32 %s18, %s25
      %p126 = scmp.eq.s32.totalorder %s125, 0
      %s128 = sadd.s32 %s127, 1
      %s129 = scalar_select %p126, %s127, %s128
      %p132 = pneg %p126
      %p133 = scmp.eq.s32.totalorder %s18, 1
      %p134 = por %p132, %p133
      %p135 = scmp.ne.s32.totalorder %s127, %s130
      %p136 = scmp.eq.s32.totalorder %s18, 0
      %p137 = por %p135, %p136
      %p138 = scmp.ne.s32.totalorder %s127, %s130
      %p139 = scmp.eq.s32.totalorder %s23, 1
      %p140 = por %p138, %p139
      %p141 = scmp.ne.s32.totalorder %s130, %s131
      %p142 = scmp.eq.s32.totalorder %s23, 0
      %p143 = por %p141, %p142
      %p144 = scmp.ne.s32.totalorder %s130, %s131
      %p145 = scmp.eq.s32.totalorder %s24, 1
      %p146 = por %p144, %p145
      %p148 = scmp.ne.s32.totalorder %s131, %s147
      %p149 = scmp.eq.s32.totalorder %s24, 0
      %p150 = por %p148, %p149
      %p151 = scmp.le.s32.totalorder 1, %s18
      %p152 = scmp.lt.s32.totalorder %s18, 3
      %p153 = pnand %p151, %p152
      %p154 = pneg %p153
      // Predicated region
      $region9: #{tpu_custom_call.1} parent=5 // pred_check
        _
      $region10: #{tpu_custom_call.1} parent=5 // pred_check_branch
        %156 = sbr.rel (%p153) target = $region12
      $region11: #{tpu_custom_call.1} parent=5 // pred_region
        %s157 = ssub.s32 %s18, 1
        // Predicated region
        $region13: #{tpu_custom_call.1} parent=11 // pred_check
          %p158 = pneg %p39
        $region14: #{tpu_custom_call.1} parent=11 // pred_check_branch
          %160 = sbr.rel (%p158) target = $region16
        $region15: #{tpu_custom_call.1} parent=11 // pred_region
          %s162 = ssub.s32 4096, 4096
          %163 = vsyncadd [#allocation3], %s162
          %s164 = sshll.u32 [#allocation2], 4
          %s165 = int_to_ptr.vmem [resolvable:$true] %s164
          %170 = dma.hbm_to_vmem [thread:$0]  %s0, 4096, %s165, [#allocation3], 256, 256, 16
        $region16: #{tpu_custom_call.1} parent=11 // pred_fallthru
          _
      $region12: #{tpu_custom_call.1} parent=5 // pred_fallthru
        _
      %p171 = scmp.lt.s32.totalorder %s18, 2
      // Predicated region
      $region17: #{tpu_custom_call.1} parent=5 // pred_check
        %p172 = pneg %p171
      $region18: #{tpu_custom_call.1} parent=5 // pred_check_branch
        %174 = sbr.rel (%p172) target = $region20
      $region19: #{tpu_custom_call.1} parent=5 // pred_region
        _
      $region20: #{tpu_custom_call.1} parent=5 // pred_fallthru
        _
      %p175 = scmp.le.s32.totalorder 1, %s18
      %p176 = scmp.lt.s32.totalorder %s18, 3
      %p177 = pnand %p175, %p176
      %p178 = pneg %p177
      // Predicated region
      $region21: #{tpu_custom_call.1} parent=5 // pred_check
        _
      $region22: #{tpu_custom_call.1} parent=5 // pred_check_branch
        %180 = sbr.rel (%p177) target = $region24
      $region23: #{tpu_custom_call.1} parent=5 // pred_region
        %s181 = ssub.s32 %s18, 1
        // Predicated region
        $region25: #{tpu_custom_call.1} parent=23 // pred_check
          %p182 = pneg %p39
        $region26: #{tpu_custom_call.1} parent=23 // pred_check_branch
          %184 = sbr.rel (%p182) target = $region28
        $region27: #{tpu_custom_call.1} parent=23 // pred_region
          %185 = dma.done [#allocation3], 4096
        $region28: #{tpu_custom_call.1} parent=23 // pred_fallthru
          _
        %p186 = pneg %p39
        %p187 = pneg %p36
        %p188 = pneg %p65
        %p189 = pneg %p62
        %p190 = scmp.lt.s32.totalorder %s23, 1
        %s191 = scalar_select %p190, %s23, 1
        %s192 = scalar_lea.vmem %s1, %s191
        %p193 = pneg %p91
        %p194 = pneg %p88
        %s195 = sand.u32 %s78, 1
        %s196 = scalar_lea.sflag [#allocation4], %s195
        %s197 = sand.u32 %s78, 1
        %s198 = scalar_lea.vmem [#allocation5], %s197
        %p199 = pneg %p117
        %p200 = pneg %p114
        %s201 = sand.u32 %s23, 1
        %s202 = scalar_lea.sflag [#allocation7], %s201
        %s203 = sand.u32 %s104, 1
        %s204 = scalar_lea.vmem [#allocation6], %s203
        %p205 = pneg %p143
        %p206 = pneg %p140
        %s207 = sand.u32 %s23, 1
        %s208 = scalar_lea.sflag [#allocation7], %s207
        %s209 = sand.u32 %s130, 1
        %s210 = scalar_lea.vmem [#allocation8], %s209
        %p211 = scmp.lt.s32.totalorder %s23, 1
        %s212 = scalar_select %p211, %s23, 1
        %s213 = scalar_lea.vmem %s1, %s212
        %s214 = smul.u32 %s23, 64
        %v215 = vld [vmem:[#allocation2] sm:$0xff]
        %v216 = vld [vmem:[#allocation2 + $0x8] sm:$0xff]
        %v217 = vld [vmem:[#allocation2 + $0x10] sm:$0xff]
        %v218 = vld [vmem:[#allocation2 + $0x18] sm:$0xff]
        %v219 = vld [vmem:[#allocation2 + $0x20] sm:$0xff]
        %v220 = vld [vmem:[#allocation2 + $0x28] sm:$0xff]
        %v221 = vld [vmem:[#allocation2 + $0x30] sm:$0xff]
        %v222 = vld [vmem:[#allocation2 + $0x38] sm:$0xff]
        %v223 = vld [vmem:[#allocation2 + $0x40] sm:$0xff]
        %v224 = vld [vmem:[#allocation2 + $0x48] sm:$0xff]
        %v225 = vld [vmem:[#allocation2 + $0x50] sm:$0xff]
        %v226 = vld [vmem:[#allocation2 + $0x58] sm:$0xff]
        %v227 = vld [vmem:[#allocation2 + $0x60] sm:$0xff]
        %v228 = vld [vmem:[#allocation2 + $0x68] sm:$0xff]
        %v229 = vld [vmem:[#allocation2 + $0x70] sm:$0xff]
        %v230 = vld [vmem:[#allocation2 + $0x78] sm:$0xff]
        %v231 = vld [vmem:[#allocation2 + $0x80] sm:$0xff]
        %v232 = vld [vmem:[#allocation2 + $0x88] sm:$0xff]
        %v233 = vld [vmem:[#allocation2 + $0x90] sm:$0xff]
        %v234 = vld [vmem:[#allocation2 + $0x98] sm:$0xff]
        %v235 = vld [vmem:[#allocation2 + $0xa0] sm:$0xff]
        %v236 = vld [vmem:[#allocation2 + $0xa8] sm:$0xff]
        %v237 = vld [vmem:[#allocation2 + $0xb0] sm:$0xff]
        %v238 = vld [vmem:[#allocation2 + $0xb8] sm:$0xff]
        %v239 = vld [vmem:[#allocation2 + $0xc0] sm:$0xff]
        %v240 = vld [vmem:[#allocation2 + $0xc8] sm:$0xff]
        %v241 = vld [vmem:[#allocation2 + $0xd0] sm:$0xff]
        %v242 = vld [vmem:[#allocation2 + $0xd8] sm:$0xff]
        %v243 = vld [vmem:[#allocation2 + $0xe0] sm:$0xff]
        %v244 = vld [vmem:[#allocation2 + $0xe8] sm:$0xff]
        %v245 = vld [vmem:[#allocation2 + $0xf0] sm:$0xff]
        %v246 = vld [vmem:[#allocation2 + $0xf8] sm:$0xff]
        %s247 = sshra.s32 %s214, 3
        %s248 = sand.u32 %s214, 7
        %s249 = smul.u32 %s247, 2
        %s250 = smul.addr %s249, 8
        %s251 = scalar_lea.vmem [#allocation2], %s250
        %v252 = vld [vmem:[%s251] sm:$0xff]
        %v253 = vld [vmem:[%s251 + $0x8] sm:$0xff]
        %v254 = vld [vmem:[%s251 + $0x10] sm:$0xff]
        %v255 = vld [vmem:[%s251 + $0x18] sm:$0xff]
        %v256 = vld [vmem:[%s251 + $0x20] sm:$0xff]
        %v257 = vld [vmem:[%s251 + $0x28] sm:$0xff]
        %v258 = vld [vmem:[%s251 + $0x30] sm:$0xff]
        %v259 = vld [vmem:[%s251 + $0x38] sm:$0xff]
        %v260 = vld [vmem:[%s251 + $0x40] sm:$0xff]
        %v261 = vld [vmem:[%s251 + $0x48] sm:$0xff]
        %v262 = vld [vmem:[%s251 + $0x50] sm:$0xff]
        %v263 = vld [vmem:[%s251 + $0x58] sm:$0xff]
        %v264 = vld [vmem:[%s251 + $0x60] sm:$0xff]
        %v265 = vld [vmem:[%s251 + $0x68] sm:$0xff]
        %v266 = vld [vmem:[%s251 + $0x70] sm:$0xff]
        %v267 = vld [vmem:[%s251 + $0x78] sm:$0xff]
        %268 = vmatprep.subr.mxu0 %v216
        %269 = vmatpush1.xpose.msra.mxu0 %v215
        %270 = vmatprep.subr.mxu0 %v218
        %271 = vmatpush1.xpose.msra.mxu0 %v217
        %272 = vmatprep.subr.mxu0 %v220
        %273 = vmatpush1.xpose.msra.mxu0 %v219
        %274 = vmatprep.subr.mxu0 %v222
        %275 = vmatpush1.xpose.msra.mxu0 %v221
        %276 = vmatprep.subr.mxu0 %v224
        %277 = vmatpush1.xpose.msra.mxu0 %v223
        %278 = vmatprep.subr.mxu0 %v226
        %279 = vmatpush1.xpose.msra.mxu0 %v225
        %280 = vmatprep.subr.mxu0 %v228
        %281 = vmatpush1.xpose.msra.mxu0 %v227
        %282 = vmatprep.subr.mxu0 %v230
        %283 = vmatpush1.xpose.msra.mxu0 %v229
        %284 = vmatprep.subr.mxu0 %v232
        %285 = vmatpush1.xpose.msra.mxu0 %v231
        %286 = vmatprep.subr.mxu0 %v234
        %287 = vmatpush1.xpose.msra.mxu0 %v233
        %288 = vmatprep.subr.mxu0 %v236
        %289 = vmatpush1.xpose.msra.mxu0 %v235
        %290 = vmatprep.subr.mxu0 %v238
        %291 = vmatpush1.xpose.msra.mxu0 %v237
        %292 = vmatprep.subr.mxu0 %v240
        %293 = vmatpush1.xpose.msra.mxu0 %v239
        %294 = vmatprep.subr.mxu0 %v242
        %295 = vmatpush1.xpose.msra.mxu0 %v241
        %296 = vmatprep.subr.mxu0 %v244
        %297 = vmatpush1.xpose.msra.mxu0 %v243
        %298 = vmatprep.subr.mxu0 %v246
        %299 = vmatpush1.xpose.msra.mxu0 %v245
        %300 = vmatprep.subr.mxu0 0.0
        %301 = vmatpush1.xpose.msra.mxu0 0.0
        %302 = vmatprep.subr.mxu0 0.0
        %303 = vmatpush1.xpose.msra.mxu0 0.0
        %304 = vmatprep.subr.mxu0 0.0
        %305 = vmatpush1.xpose.msra.mxu0 0.0
        %306 = vmatprep.subr.mxu0 0.0
        %307 = vmatpush1.xpose.msra.mxu0 0.0
        %308 = vmatprep.subr.mxu0 0.0
        %309 = vmatpush1.xpose.msra.mxu0 0.0
        %310 = vmatprep.subr.mxu0 0.0
        %311 = vmatpush1.xpose.msra.mxu0 0.0
        %312 = vmatprep.subr.mxu0 0.0
        %313 = vmatpush1.xpose.msra.mxu0 0.0
        %314 = vmatprep.subr.mxu0 0.0
        %315 = vmatpush1.xpose.msra.mxu0 0.0
        %316 = vmatprep.subr.mxu0 0.0
        %317 = vmatpush1.xpose.msra.mxu0 0.0
        %318 = vmatprep.subr.mxu0 0.0
        %319 = vmatpush1.xpose.msra.mxu0 0.0
        %320 = vmatprep.subr.mxu0 0.0
        %321 = vmatpush1.xpose.msra.mxu0 0.0
        %322 = vmatprep.subr.mxu0 0.0
        %323 = vmatpush1.xpose.msra.mxu0 0.0
        %324 = vmatprep.subr.mxu0 0.0
        %325 = vmatpush1.xpose.msra.mxu0 0.0
        %326 = vmatprep.subr.mxu0 0.0
        %327 = vmatpush1.xpose.msra.mxu0 0.0
        %328 = vmatprep.subr.mxu0 0.0
        %329 = vmatpush1.xpose.msra.mxu0 0.0
        %330 = vmatprep.subr.mxu0 0.0
        %331 = vmatpush1.xpose.msra.mxu0 0.0
        %332 = vmatprep.mubr.f32.mxu0 %v253
        %333 = vmatmul.mubr.f32.gmra.mrb[0].mxu0 %v252
        %v334 = vpop.f32.mrb[0].mxu0
        %v335 = vadd.f32 0.0, %v334
        %v336 = vpop.f32.mrb[0].mxu0
        %337 = vmatprep.mubr.f32.mxu0 %v255
        %338 = vmatmul.mubr.f32.gmra.mrb[0].mxu0 %v254
        %v339 = vpop.f32.mrb[0].mxu0
        %v340 = vadd.f32 0.0, %v339
        %v341 = vpop.f32.mrb[0].mxu0
        %342 = vmatprep.mubr.f32.mxu0 %v257
        %343 = vmatmul.mubr.f32.gmra.mrb[0].mxu0 %v256
        %v344 = vpop.f32.mrb[0].mxu0
        %v345 = vadd.f32 0.0, %v344
        %v346 = vpop.f32.mrb[0].mxu0
        %347 = vmatprep.mubr.f32.mxu0 %v259
        %348 = vmatmul.mubr.f32.gmra.mrb[0].mxu0 %v258
        %v349 = vpop.f32.mrb[0].mxu0
        %v350 = vadd.f32 0.0, %v349
        %v351 = vpop.f32.mrb[0].mxu0
        %352 = vmatprep.mubr.f32.mxu0 %v261
        %353 = vmatmul.mubr.f32.gmra.mrb[0].mxu0 %v260
        %v354 = vpop.f32.mrb[0].mxu0
        %v355 = vadd.f32 0.0, %v354
        %v356 = vpop.f32.mrb[0].mxu0
        %357 = vmatprep.mubr.f32.mxu0 %v263
        %358 = vmatmul.mubr.f32.gmra.mrb[0].mxu0 %v262
        %v359 = vpop.f32.mrb[0].mxu0
        %v360 = vadd.f32 0.0, %v359
        %v361 = vpop.f32.mrb[0].mxu0
        %362 = vmatprep.mubr.f32.mxu0 %v265
        %363 = vmatmul.mubr.f32.gmra.mrb[0].mxu0 %v264
        %v364 = vpop.f32.mrb[0].mxu0
        %v365 = vadd.f32 0.0, %v364
        %v366 = vpop.f32.mrb[0].mxu0
        %367 = vmatprep.mubr.f32.mxu0 %v267
        %368 = vmatmul.mubr.f32.gmra.mrb[0].mxu0 %v266
        %v369 = vpop.f32.mrb[0].mxu0
        %v370 = vadd.f32 0.0, %v369
        %v371 = vpop.f32.mrb[0].mxu0
        %372 = vdwg.mxu0
        %v373 = vmul.f32 %v252, 2.0
        %v374 = vmul.f32 %v254, 2.0
        %v375 = vmul.f32 %v256, 2.0
        %v376 = vmul.f32 %v258, 2.0
        %v377 = vmul.f32 %v260, 2.0
        %v378 = vmul.f32 %v262, 2.0
        %v379 = vmul.f32 %v264, 2.0
        %v380 = vmul.f32 %v266, 2.0
        %381 = vmatprep.subr.mxu0 0.0
        %382 = vmatpush1.xpose.msra.mxu0 %v216
        %383 = vmatprep.subr.mxu0 0.0
        %384 = vmatpush1.xpose.msra.mxu0 %v218
        %385 = vmatprep.subr.mxu0 0.0
        %386 = vmatpush1.xpose.msra.mxu0 %v220
        %387 = vmatprep.subr.mxu0 0.0
        %388 = vmatpush1.xpose.msra.mxu0 %v222
        %389 = vmatprep.subr.mxu0 0.0
        %390 = vmatpush1.xpose.msra.mxu0 %v224
        %391 = vmatprep.subr.mxu0 0.0
        %392 = vmatpush1.xpose.msra.mxu0 %v226
        %393 = vmatprep.subr.mxu0 0.0
        %394 = vmatpush1.xpose.msra.mxu0 %v228
        %395 = vmatprep.subr.mxu0 0.0
        %396 = vmatpush1.xpose.msra.mxu0 %v230
        %397 = vmatprep.subr.mxu0 0.0
        %398 = vmatpush1.xpose.msra.mxu0 %v232
        %399 = vmatprep.subr.mxu0 0.0
        %400 = vmatpush1.xpose.msra.mxu0 %v234
        %401 = vmatprep.subr.mxu0 0.0
        %402 = vmatpush1.xpose.msra.mxu0 %v236
        %403 = vmatprep.subr.mxu0 0.0
        %404 = vmatpush1.xpose.msra.mxu0 %v238
        %405 = vmatprep.subr.mxu0 0.0
        %406 = vmatpush1.xpose.msra.mxu0 %v240
        %407 = vmatprep.subr.mxu0 0.0
        %408 = vmatpush1.xpose.msra.mxu0 %v242
        %409 = vmatprep.subr.mxu0 0.0
        %410 = vmatpush1.xpose.msra.mxu0 %v244
        %411 = vmatprep.subr.mxu0 0.0
        %412 = vmatpush1.xpose.msra.mxu0 %v246
        %413 = vmatprep.subr.mxu0 0.0
        %414 = vmatpush1.xpose.msra.mxu0 0.0
        %415 = vmatprep.subr.mxu0 0.0
        %416 = vmatpush1.xpose.msra.mxu0 0.0
        %417 = vmatprep.subr.mxu0 0.0
        %418 = vmatpush1.xpose.msra.mxu0 0.0
        %419 = vmatprep.subr.mxu0 0.0
        %420 = vmatpush1.xpose.msra.mxu0 0.0
        %421 = vmatprep.subr.mxu0 0.0
        %422 = vmatpush1.xpose.msra.mxu0 0.0
        %423 = vmatprep.subr.mxu0 0.0
        %424 = vmatpush1.xpose.msra.mxu0 0.0
        %425 = vmatprep.subr.mxu0 0.0
        %426 = vmatpush1.xpose.msra.mxu0 0.0
        %427 = vmatprep.subr.mxu0 0.0
        %428 = vmatpush1.xpose.msra.mxu0 0.0
        %429 = vmatprep.subr.mxu0 0.0
        %430 = vmatpush1.xpose.msra.mxu0 0.0
        %431 = vmatprep.subr.mxu0 0.0
        %432 = vmatpush1.xpose.msra.mxu0 0.0
        %433 = vmatprep.subr.mxu0 0.0
        %434 = vmatpush1.xpose.msra.mxu0 0.0
        %435 = vmatprep.subr.mxu0 0.0
        %436 = vmatpush1.xpose.msra.mxu0 0.0
        %437 = vmatprep.subr.mxu0 0.0
        %438 = vmatpush1.xpose.msra.mxu0 0.0
        %439 = vmatprep.subr.mxu0 0.0
        %440 = vmatpush1.xpose.msra.mxu0 0.0
        %441 = vmatprep.subr.mxu0 0.0
        %442 = vmatpush1.xpose.msra.mxu0 0.0
        %443 = vmatprep.subr.mxu0 0.0
        %444 = vmatpush1.xpose.msra.mxu0 0.0
        %445 = vmatprep.mubr.f32.mxu0 0.0
        %446 = vmatmul.mubr.f32.gmra.mrb[0].mxu0 %v373
        %v447 = vpop.f32.mrb[0].mxu0
        %v448 = vadd.f32 0.0, %v447
        %v449 = vpop.f32.mrb[0].mxu0
        %450 = vmatprep.mubr.f32.mxu0 0.0
        %451 = vmatmul.mubr.f32.gmra.mrb[0].mxu0 %v374
        %v452 = vpop.f32.mrb[0].mxu0
        %v453 = vadd.f32 0.0, %v452
        %v454 = vpop.f32.mrb[0].mxu0
        %455 = vmatprep.mubr.f32.mxu0 0.0
        %456 = vmatmul.mubr.f32.gmra.mrb[0].mxu0 %v375
        %v457 = vpop.f32.mrb[0].mxu0
        %v458 = vadd.f32 0.0, %v457
        %v459 = vpop.f32.mrb[0].mxu0
        %460 = vmatprep.mubr.f32.mxu0 0.0
        %461 = vmatmul.mubr.f32.gmra.mrb[0].mxu0 %v376
        %v462 = vpop.f32.mrb[0].mxu0
        %v463 = vadd.f32 0.0, %v462
        %v464 = vpop.f32.mrb[0].mxu0
        %465 = vmatprep.mubr.f32.mxu0 0.0
        %466 = vmatmul.mubr.f32.gmra.mrb[0].mxu0 %v377
        %v467 = vpop.f32.mrb[0].mxu0
        %v468 = vadd.f32 0.0, %v467
        %v469 = vpop.f32.mrb[0].mxu0
        %470 = vmatprep.mubr.f32.mxu0 0.0
        %471 = vmatmul.mubr.f32.gmra.mrb[0].mxu0 %v378
        %v472 = vpop.f32.mrb[0].mxu0
        %v473 = vadd.f32 0.0, %v472
        %v474 = vpop.f32.mrb[0].mxu0
        %475 = vmatprep.mubr.f32.mxu0 0.0
        %476 = vmatmul.mubr.f32.gmra.mrb[0].mxu0 %v379
        %v477 = vpop.f32.mrb[0].mxu0
        %v478 = vadd.f32 0.0, %v477
        %v479 = vpop.f32.mrb[0].mxu0
        %480 = vmatprep.mubr.f32.mxu0 0.0
        %481 = vmatmul.mubr.f32.gmra.mrb[0].mxu0 %v380
        %v482 = vpop.f32.mrb[0].mxu0
        %v483 = vadd.f32 0.0, %v482
        %v484 = vpop.f32.mrb[0].mxu0
        %485 = vdwg.mxu0
        %486 = vmax.xlane.f32.xlu0 %v335
        %v487 = vpop.xlane.xlu0 %486
        %488 = vmax.xlane.f32.xlu0 %v340
        %v489 = vpop.xlane.xlu0 %488
        %490 = vmax.xlane.f32.xlu0 %v345
        %v491 = vpop.xlane.xlu0 %490
        %492 = vmax.xlane.f32.xlu0 %v350
        %v493 = vpop.xlane.xlu0 %492
        %494 = vmax.xlane.f32.xlu0 %v355
        %v495 = vpop.xlane.xlu0 %494
        %496 = vmax.xlane.f32.xlu0 %v360
        %v497 = vpop.xlane.xlu0 %496
        %498 = vmax.xlane.f32.xlu0 %v365
        %v499 = vpop.xlane.xlu0 %498
        %500 = vmax.xlane.f32.xlu0 %v370
        %v501 = vpop.xlane.xlu0 %500
        %v502 = vsub.f32 %v335, %v487
        %v503 = vsub.f32 %v340, %v489
        %v504 = vsub.f32 %v345, %v491
        %v505 = vsub.f32 %v350, %v493
        %v506 = vsub.f32 %v355, %v495
        %v507 = vsub.f32 %v360, %v497
        %v508 = vsub.f32 %v365, %v499
        %v509 = vsub.f32 %v370, %v501
        %v510 = vmul.f32 %v502, 1.442695
        %v511 = vpow.pop %v510
        %v512 = vmul.f32 %v503, 1.442695
        %v513 = vpow.pop %v512
        %v514 = vmul.f32 %v504, 1.442695
        %v515 = vpow.pop %v514
        %v516 = vmul.f32 %v505, 1.442695
        %v517 = vpow.pop %v516
        %v518 = vmul.f32 %v506, 1.442695
        %v519 = vpow.pop %v518
        %v520 = vmul.f32 %v507, 1.442695
        %v521 = vpow.pop %v520
        %v522 = vmul.f32 %v508, 1.442695
        %v523 = vpow.pop %v522
        %v524 = vmul.f32 %v509, 1.442695
        %v525 = vpow.pop %v524
        %526 = vadd.xlane.f32.xlu0 %v511
        %v527 = vpop.xlane.xlu0 %526
        %528 = vadd.xlane.f32.xlu0 %v513
        %v529 = vpop.xlane.xlu0 %528
        %530 = vadd.xlane.f32.xlu0 %v515
        %v531 = vpop.xlane.xlu0 %530
        %532 = vadd.xlane.f32.xlu0 %v517
        %v533 = vpop.xlane.xlu0 %532
        %534 = vadd.xlane.f32.xlu0 %v519
        %v535 = vpop.xlane.xlu0 %534
        %536 = vadd.xlane.f32.xlu0 %v521
        %v537 = vpop.xlane.xlu0 %536
        %538 = vadd.xlane.f32.xlu0 %v523
        %v539 = vpop.xlane.xlu0 %538
        %540 = vadd.xlane.f32.xlu0 %v525
        %v541 = vpop.xlane.xlu0 %540
        %v542 = vrcp.pop %v527
        %v543 = vrcp.pop %v529
        %v544 = vrcp.pop %v531
        %v545 = vrcp.pop %v533
        %v546 = vrcp.pop %v535
        %v547 = vrcp.pop %v537
        %v548 = vrcp.pop %v539
        %v549 = vrcp.pop %v541
        %v550 = vmul.f32 %v527, %v542
        %v551 = vmul.f32 %v529, %v543
        %v552 = vmul.f32 %v531, %v544
        %v553 = vmul.f32 %v533, %v545
        %v554 = vmul.f32 %v535, %v546
        %v555 = vmul.f32 %v537, %v547
        %v556 = vmul.f32 %v539, %v548
        %v557 = vmul.f32 %v541, %v549
        %v558 = vsub.f32 2.0, %v550
        %v559 = vsub.f32 2.0, %v551
        %v560 = vsub.f32 2.0, %v552
        %v561 = vsub.f32 2.0, %v553
        %v562 = vsub.f32 2.0, %v554
        %v563 = vsub.f32 2.0, %v555
        %v564 = vsub.f32 2.0, %v556
        %v565 = vsub.f32 2.0, %v557
        %v566 = vmul.f32 %v542, %v558
        %v567 = vmul.f32 %v543, %v559
        %v568 = vmul.f32 %v544, %v560
        %v569 = vmul.f32 %v545, %v561
        %v570 = vmul.f32 %v546, %v562
        %v571 = vmul.f32 %v547, %v563
        %v572 = vmul.f32 %v548, %v564
        %v573 = vmul.f32 %v549, %v565
        %574 = vmax.xlane.f32.xlu0 %v448
        %v575 = vpop.xlane.xlu0 %574
        %576 = vmax.xlane.f32.xlu0 %v453
        %v577 = vpop.xlane.xlu0 %576
        %578 = vmax.xlane.f32.xlu0 %v458
        %v579 = vpop.xlane.xlu0 %578
        %580 = vmax.xlane.f32.xlu0 %v463
        %v581 = vpop.xlane.xlu0 %580
        %582 = vmax.xlane.f32.xlu0 %v468
        %v583 = vpop.xlane.xlu0 %582
        %584 = vmax.xlane.f32.xlu0 %v473
        %v585 = vpop.xlane.xlu0 %584
        %586 = vmax.xlane.f32.xlu0 %v478
        %v587 = vpop.xlane.xlu0 %586
        %588 = vmax.xlane.f32.xlu0 %v483
        %v589 = vpop.xlane.xlu0 %588
        %v590 = vsub.f32 %v448, %v575
        %v591 = vsub.f32 %v453, %v577
        %v592 = vsub.f32 %v458, %v579
        %v593 = vsub.f32 %v463, %v581
        %v594 = vsub.f32 %v468, %v583
        %v595 = vsub.f32 %v473, %v585
        %v596 = vsub.f32 %v478, %v587
        %v597 = vsub.f32 %v483, %v589
        %v598 = vmul.f32 %v590, 1.442695
        %v599 = vpow.pop %v598
        %v600 = vmul.f32 %v591, 1.442695
        %v601 = vpow.pop %v600
        %v602 = vmul.f32 %v592, 1.442695
        %v603 = vpow.pop %v602
        %v604 = vmul.f32 %v593, 1.442695
        %v605 = vpow.pop %v604
        %v606 = vmul.f32 %v594, 1.442695
        %v607 = vpow.pop %v606
        %v608 = vmul.f32 %v595, 1.442695
        %v609 = vpow.pop %v608
        %v610 = vmul.f32 %v596, 1.442695
        %v611 = vpow.pop %v610
        %v612 = vmul.f32 %v597, 1.442695
        %v613 = vpow.pop %v612
        %614 = vadd.xlane.f32.xlu0 %v599
        %v615 = vpop.xlane.xlu0 %614
        %616 = vadd.xlane.f32.xlu0 %v601
        %v617 = vpop.xlane.xlu0 %616
        %618 = vadd.xlane.f32.xlu0 %v603
        %v619 = vpop.xlane.xlu0 %618
        %620 = vadd.xlane.f32.xlu0 %v605
        %v621 = vpop.xlane.xlu0 %620
        %622 = vadd.xlane.f32.xlu0 %v607
        %v623 = vpop.xlane.xlu0 %622
        %624 = vadd.xlane.f32.xlu0 %v609
        %v625 = vpop.xlane.xlu0 %624
        %626 = vadd.xlane.f32.xlu0 %v611
        %v627 = vpop.xlane.xlu0 %626
        %628 = vadd.xlane.f32.xlu0 %v613
        %v629 = vpop.xlane.xlu0 %628
        %v630 = vlog2.pop %v615
        %v631 = vmul.f32 %v630, 0.6931472
        %v632 = vlog2.pop %v617
        %v633 = vmul.f32 %v632, 0.6931472
        %v634 = vlog2.pop %v619
        %v635 = vmul.f32 %v634, 0.6931472
        %v636 = vlog2.pop %v621
        %v637 = vmul.f32 %v636, 0.6931472
        %v638 = vlog2.pop %v623
        %v639 = vmul.f32 %v638, 0.6931472
        %v640 = vlog2.pop %v625
        %v641 = vmul.f32 %v640, 0.6931472
        %v642 = vlog2.pop %v627
        %v643 = vmul.f32 %v642, 0.6931472
        %v644 = vlog2.pop %v629
        %v645 = vmul.f32 %v644, 0.6931472
        %v646 = vadd.f32 %v575, %v631
        %v647 = vadd.f32 %v577, %v633
        %v648 = vadd.f32 %v579, %v635
        %v649 = vadd.f32 %v581, %v637
        %v650 = vadd.f32 %v583, %v639
        %v651 = vadd.f32 %v585, %v641
        %v652 = vadd.f32 %v587, %v643
        %v653 = vadd.f32 %v589, %v645
        %v654 = vmul.f32 %v511, %v448
        %v655 = vmul.f32 %v513, %v453
        %v656 = vmul.f32 %v515, %v458
        %v657 = vmul.f32 %v517, %v463
        %v658 = vmul.f32 %v519, %v468
        %v659 = vmul.f32 %v521, %v473
        %v660 = vmul.f32 %v523, %v478
        %v661 = vmul.f32 %v525, %v483
        %662 = vadd.xlane.f32.xlu0 %v654
        %v663 = vpop.xlane.xlu0 %662
        %664 = vadd.xlane.f32.xlu0 %v655
        %v665 = vpop.xlane.xlu0 %664
        %666 = vadd.xlane.f32.xlu0 %v656
        %v667 = vpop.xlane.xlu0 %666
        %668 = vadd.xlane.f32.xlu0 %v657
        %v669 = vpop.xlane.xlu0 %668
        %670 = vadd.xlane.f32.xlu0 %v658
        %v671 = vpop.xlane.xlu0 %670
        %672 = vadd.xlane.f32.xlu0 %v659
        %v673 = vpop.xlane.xlu0 %672
        %674 = vadd.xlane.f32.xlu0 %v660
        %v675 = vpop.xlane.xlu0 %674
        %676 = vadd.xlane.f32.xlu0 %v661
        %v677 = vpop.xlane.xlu0 %676
        %v678 = vmul.f32 %v566, %v663
        %v679 = vmul.f32 %v567, %v665
        %v680 = vmul.f32 %v568, %v667
        %v681 = vmul.f32 %v569, %v669
        %v682 = vmul.f32 %v570, %v671
        %v683 = vmul.f32 %v571, %v673
        %v684 = vmul.f32 %v572, %v675
        %v685 = vmul.f32 %v573, %v677
        %v686 = vmul.f32 %v678, 2.0
        %v687 = vmul.f32 %v679, 2.0
        %v688 = vmul.f32 %v680, 2.0
        %v689 = vmul.f32 %v681, 2.0
        %v690 = vmul.f32 %v682, 2.0
        %v691 = vmul.f32 %v683, 2.0
        %v692 = vmul.f32 %v684, 2.0
        %v693 = vmul.f32 %v685, 2.0
        %v694 = vsub.f32 %v646, %v686
        %v695 = vsub.f32 %v647, %v687
        %v696 = vsub.f32 %v648, %v688
        %v697 = vsub.f32 %v649, %v689
        %v698 = vsub.f32 %v650, %v690
        %v699 = vsub.f32 %v651, %v691
        %v700 = vsub.f32 %v652, %v692
        %v701 = vsub.f32 %v653, %v693
        %v702 = vadd.f32 %v694, %v695
        %v703 = vadd.f32 %v702, %v696
        %v704 = vadd.f32 %v703, %v697
        %v705 = vadd.f32 %v704, %v698
        %v706 = vadd.f32 %v705, %v699
        %v707 = vadd.f32 %v706, %v700
        %v708 = vadd.f32 %v707, %v701
        %v709 = vrot.slane %v708, 4
        %v710 = vadd.f32 %v708, %v709
        %v711 = vrot.slane %v710, 2
        %v712 = vadd.f32 %v710, %v711
        %v713 = vrot.slane %v712, 1
        %v714 = vadd.f32 %v712, %v713
        %vm715 = vcmask 0
        %716 = vst.msk [vmem:[%s213] sm:$0x1] %vm715, %v714
        %v717 = vmul.f32 %v511, %v566
        %v718 = vmul.f32 %v513, %v567
        %v719 = vmul.f32 %v515, %v568
        %v720 = vmul.f32 %v517, %v569
        %v721 = vmul.f32 %v519, %v570
        %v722 = vmul.f32 %v521, %v571
        %v723 = vmul.f32 %v523, %v572
        %v724 = vmul.f32 %v525, %v573
        %v725 = vadd.f32 %v717, %v718
        %v726 = vadd.f32 %v725, %v719
        %v727 = vadd.f32 %v726, %v720
        %v728 = vadd.f32 %v727, %v721
        %v729 = vadd.f32 %v728, %v722
        %v730 = vadd.f32 %v729, %v723
        %v731 = vadd.f32 %v730, %v724
        %v732 = vrot.slane %v731, 4
        %v733 = vadd.f32 %v731, %v732
        %v734 = vrot.slane %v733, 2
        %v735 = vadd.f32 %v733, %v734
        %v736 = vrot.slane %v735, 1
        %v737 = vadd.f32 %v735, %v736
        %738 = vst [vmem:[%s198] sm:$0x1] %v737
        %v739 = vmax.f32 %v448, %v468
        %v740 = vmax.f32 %v453, %v473
        %v741 = vmax.f32 %v458, %v478
        %v742 = vmax.f32 %v463, %v483
        %v743 = vmax.f32 %v739, %v740
        %v744 = vmax.f32 %v741, %v742
        %v745 = vmax.f32 %v743, %v744
        %v746 = vrot.slane %v745, 4
        %v747 = vmax.f32 %v745, %v746
        %v748 = vrot.slane %v747, 2
        %v749 = vmax.f32 %v747, %v748
        %v750 = vrot.slane %v749, 1
        %v751 = vmax.f32 %v749, %v750
        %v752 = vmax.f32 %v575, %v583
        %v753 = vmax.f32 %v577, %v585
        %v754 = vmax.f32 %v579, %v587
        %v755 = vmax.f32 %v581, %v589
        %v756 = vmax.f32 %v752, %v753
        %v757 = vmax.f32 %v754, %v755
        %v758 = vmax.f32 %v756, %v757
        %v759 = vrot.slane %v758, 4
        %v760 = vmax.f32 %v758, %v759
        %v761 = vrot.slane %v760, 2
        %v762 = vmax.f32 %v760, %v761
        %v763 = vrot.slane %v762, 1
        %v764 = vmax.f32 %v762, %v763
        %v765 = vsub.f32 %v575, %v764
        %v766 = vsub.f32 %v577, %v764
        %v767 = vsub.f32 %v579, %v764
        %v768 = vsub.f32 %v581, %v764
        %v769 = vsub.f32 %v583, %v764
        %v770 = vsub.f32 %v585, %v764
        %v771 = vsub.f32 %v587, %v764
        %v772 = vsub.f32 %v589, %v764
        %v773 = vmul.f32 %v765, 1.442695
        %v774 = vpow.pop %v773
        %v775 = vmul.f32 %v766, 1.442695
        %v776 = vpow.pop %v775
        %v777 = vmul.f32 %v767, 1.442695
        %v778 = vpow.pop %v777
        %v779 = vmul.f32 %v768, 1.442695
        %v780 = vpow.pop %v779
        %v781 = vmul.f32 %v769, 1.442695
        %v782 = vpow.pop %v781
        %v783 = vmul.f32 %v770, 1.442695
        %v784 = vpow.pop %v783
        %v785 = vmul.f32 %v771, 1.442695
        %v786 = vpow.pop %v785
        %v787 = vmul.f32 %v772, 1.442695
        %v788 = vpow.pop %v787
        %v789 = vmul.f32 %v599, %v774
        %v790 = vmul.f32 %v601, %v776
        %v791 = vmul.f32 %v603, %v778
        %v792 = vmul.f32 %v605, %v780
        %v793 = vmul.f32 %v607, %v782
        %v794 = vmul.f32 %v609, %v784
        %v795 = vmul.f32 %v611, %v786
        %v796 = vmul.f32 %v613, %v788
        %v797 = vadd.f32 %v789, %v790
        %v798 = vadd.f32 %v797, %v791
        %v799 = vadd.f32 %v798, %v792
        %v800 = vadd.f32 %v799, %v793
        %v801 = vadd.f32 %v800, %v794
        %v802 = vadd.f32 %v801, %v795
        %v803 = vadd.f32 %v802, %v796
        %v804 = vrot.slane %v803, 4
        %v805 = vadd.f32 %v803, %v804
        %v806 = vrot.slane %v805, 2
        %v807 = vadd.f32 %v805, %v806
        %v808 = vrot.slane %v807, 1
        %v809 = vadd.f32 %v807, %v808
        %v810 = vsub.f32 %v764, %v751
        %v811 = vmul.f32 %v810, 1.442695
        %v812 = vpow.pop %v811
        %v813 = vmul.f32 %v809, %v812
        %814 = vst [vmem:[%s204] sm:$0x1] %v751
        %815 = vst [vmem:[%s210] sm:$0x1] %v813
        %p816 = scmp.lt.s32.totalorder %s23, 1
        %s817 = scalar_select %p816, %s23, 1
        %s818 = scalar_lea.vmem %s1, %s817
        %s819 = sand.u32 %s78, 1
        %s820 = scalar_lea.sflag [#allocation4], %s819
        %s821 = sand.u32 %s78, 1
        %s822 = scalar_lea.vmem [#allocation5], %s821
        %s823 = sand.u32 %s23, 1
        %s824 = scalar_lea.sflag [#allocation7], %s823
        %s825 = sand.u32 %s104, 1
        %s826 = scalar_lea.vmem [#allocation6], %s825
        %s827 = sand.u32 %s23, 1
        %s828 = scalar_lea.sflag [#allocation7], %s827
        %s829 = sand.u32 %s130, 1
        %s830 = scalar_lea.vmem [#allocation8], %s829
        // Predicated region
        $region29: #{tpu_custom_call.1} parent=23 // pred_check
          %p831 = pneg %p62
        $region30: #{tpu_custom_call.1} parent=23 // pred_check_branch
          %833 = sbr.rel (%p831) target = $region32
        $region31: #{tpu_custom_call.1} parent=23 // pred_region
          _
        $region32: #{tpu_custom_call.1} parent=23 // pred_fallthru
          _
        // Predicated region
        $region33: #{tpu_custom_call.1} parent=23 // pred_check
          %p834 = pneg %p88
        $region34: #{tpu_custom_call.1} parent=23 // pred_check_branch
          %836 = sbr.rel (%p834) target = $region36
        $region35: #{tpu_custom_call.1} parent=23 // pred_region
          %s838 = ssub.s32 16, 16
          %839 = vsyncadd %s820, %s838
          %s840 = smul.addr %s23, 16
          %s841 = scalar_lea.hbm %s2, %s840
          %s843 = sshll.u32 %s822, 4
          %s844 = int_to_ptr.vmem [resolvable:$true] %s843
          %846 = dma.vmem_to_hbm [thread:$0]  %s844, 16, %s841, %s820
        $region36: #{tpu_custom_call.1} parent=23 // pred_fallthru
          _
        // Predicated region
        $region37: #{tpu_custom_call.1} parent=23 // pred_check
          %p847 = pneg %p114
        $region38: #{tpu_custom_call.1} parent=23 // pred_check_branch
          %849 = sbr.rel (%p847) target = $region40
        $region39: #{tpu_custom_call.1} parent=23 // pred_region
          %s851 = ssub.s32 16, 16
          %852 = vsyncadd %s824, %s851
          %s853 = smul.addr %s23, 16
          %s854 = scalar_lea.hbm %s3, %s853
          %s856 = sshll.u32 %s826, 4
          %s857 = int_to_ptr.vmem [resolvable:$true] %s856
          %859 = dma.vmem_to_hbm [thread:$0]  %s857, 16, %s854, %s824
        $region40: #{tpu_custom_call.1} parent=23 // pred_fallthru
          _
        // Predicated region
        $region41: #{tpu_custom_call.1} parent=23 // pred_check
          %p860 = pneg %p140
        $region42: #{tpu_custom_call.1} parent=23 // pred_check_branch
          %862 = sbr.rel (%p860) target = $region44
        $region43: #{tpu_custom_call.1} parent=23 // pred_region
          %s864 = ssub.s32 16, 16
          %865 = vsyncadd %s828, %s864
          %s866 = smul.addr %s23, 16
          %s867 = scalar_lea.hbm %s4, %s866
          %s869 = sshll.u32 %s830, 4
          %s870 = int_to_ptr.vmem [resolvable:$true] %s869
          %872 = dma.vmem_to_hbm [thread:$0]  %s870, 16, %s867, %s828
        $region44: #{tpu_custom_call.1} parent=23 // pred_fallthru
          _
      $region24: #{tpu_custom_call.1} parent=5 // pred_fallthru
        _
      %p873 = scmp.le.s32.totalorder 2, %s18
      // Predicated region
      $region45: #{tpu_custom_call.1} parent=5 // pred_check
        %p874 = pneg %p873
      $region46: #{tpu_custom_call.1} parent=5 // pred_check_branch
        %876 = sbr.rel (%p874) target = $region48
      $region47: #{tpu_custom_call.1} parent=5 // pred_region
        %s877 = ssub.s32 %s18, 2
        // Predicated region
        $region49: #{tpu_custom_call.1} parent=47 // pred_check
          %p878 = pneg %p68
        $region50: #{tpu_custom_call.1} parent=47 // pred_check_branch
          %880 = sbr.rel (%p878) target = $region52
        $region51: #{tpu_custom_call.1} parent=47 // pred_region
          %p881 = scmp.lt.s32.totalorder %s24, 1
          %s882 = scalar_select %p881, %s24, 1
          %s883 = scalar_lea.vmem %s1, %s882
        $region52: #{tpu_custom_call.1} parent=47 // pred_fallthru
          _
        // Predicated region
        $region53: #{tpu_custom_call.1} parent=47 // pred_check
          %p884 = pneg %p94
        $region54: #{tpu_custom_call.1} parent=47 // pred_check_branch
          %886 = sbr.rel (%p884) target = $region56
        $region55: #{tpu_custom_call.1} parent=47 // pred_region
          %s887 = sand.u32 %s79, 1
          %s888 = scalar_lea.sflag [#allocation4], %s887
          %s889 = sand.u32 %s79, 1
          %s890 = scalar_lea.vmem [#allocation5], %s889
          %891 = dma.done %s888, 16
        $region56: #{tpu_custom_call.1} parent=47 // pred_fallthru
          _
        // Predicated region
        $region57: #{tpu_custom_call.1} parent=47 // pred_check
          %p892 = pneg %p120
        $region58: #{tpu_custom_call.1} parent=47 // pred_check_branch
          %894 = sbr.rel (%p892) target = $region60
        $region59: #{tpu_custom_call.1} parent=47 // pred_region
          %s895 = sand.u32 %s24, 1
          %s896 = scalar_lea.sflag [#allocation7], %s895
          %s897 = sand.u32 %s105, 1
          %s898 = scalar_lea.vmem [#allocation6], %s897
          %899 = dma.done %s896, 16
        $region60: #{tpu_custom_call.1} parent=47 // pred_fallthru
          _
        // Predicated region
        $region61: #{tpu_custom_call.1} parent=47 // pred_check
          %p900 = pneg %p146
        $region62: #{tpu_custom_call.1} parent=47 // pred_check_branch
          %902 = sbr.rel (%p900) target = $region64
        $region63: #{tpu_custom_call.1} parent=47 // pred_region
          %s903 = sand.u32 %s24, 1
          %s904 = scalar_lea.sflag [#allocation7], %s903
          %s905 = sand.u32 %s131, 1
          %s906 = scalar_lea.vmem [#allocation8], %s905
          %907 = dma.done %s904, 16
        $region64: #{tpu_custom_call.1} parent=47 // pred_fallthru
          _
      $region48: #{tpu_custom_call.1} parent=5 // pred_fallthru
        _
    $region6: #{tpu_custom_call.1} parent=1 // loop_footer
      %s22 = sadd.s32 1, %s18
    $region7: #{tpu_custom_call.1} parent=1 // loop_footer_branch
      %17 = sbr.rel target = $region3
    $region8: #{tpu_custom_call.1} parent=1 // loop_exit
      _
    %908 = vsyncpa [#allocation3], 1
    %s909 = scalar_lea.sflag [#allocation3], 1
    %910 = vsyncpa %s909, 1
    %911 = vsyncpa [#allocation4], 1
    %s912 = scalar_lea.sflag [#allocation4], 1
    %913 = vsyncpa %s912, 1
    %914 = vsyncpa [#allocation7], 1
    %s915 = scalar_lea.sflag [#allocation7], 1
    %916 = vsyncpa %s915, 1

</llo_original>
